<compile_context>
chip_gen: v6e
topology: v6e:2x2x1
jax: 0.10.0
libtpu: 0.0.40
codegen_flags: <defaults>
</compile_context>

<pallas_src>
import jax
import jax.numpy as jnp
from jax.experimental import pallas as pl
from jax.experimental.pallas import tpu as pltpu


_LANE = 128
# Budget for the double-buffered (input + output) tiles of one grid step:
# 2 bufs * (in tile + out tile) = 4 * tT * C_pad * itemsize bytes.
_VMEM_TILE_BUDGET_BYTES = 8 * 1024 * 1024


def _round_up(n, m):
    return ((n + m - 1) // m) * m


def _transpose_kernel(x_ref, o_ref):
    # x_ref: (1, tT, C) VMEM tile, o_ref: (1, C, tT) VMEM tile.
    # Swap of the last two (sublane/lane) axes lowers to XLU vxpose ops.
    o_ref[...] = jnp.swapaxes(x_ref[...], 1, 2)


def pallas_transpose(x, dims=(1, 2), tile_t=512):
    """Pallas equivalent of torch.Tensor.transpose(*dims) for 3-D (B, T, C) input."""
    assert len(dims) == 2, "dims must be a tuple of two dimensions"
    assert x.ndim == 3, "this kernel implements the 3-D (B, T, C) case"
    d0, d1 = sorted(d % x.ndim for d in dims)
    assert (d0, d1) == (1, 2), "kernel specializes the conformer use-case: dims=(1, 2)"

    B, T, C = x.shape
    itemsize = jnp.dtype(x.dtype).itemsize

    # ---- Tile / padding selection -------------------------------------------------
    # Lane-align both sides:
    #   input  block (1, tT, C_pad): sublane dim tT (mult of 128 >= 8/16),
    #                                lane dim C_pad (mult of 128).
    #   output block (1, C_pad, tT): sublane dim C_pad, lane dim tT (mult of 128).
    C_pad = _round_up(C, _LANE)

    # Cap tT so 4 * tT * C_pad * itemsize fits the VMEM tile budget on every chip.
    max_tT = max(_LANE, (_VMEM_TILE_BUDGET_BYTES // (4 * C_pad * itemsize)) // _LANE * _LANE)
    tT = min(_round_up(max(tile_t, 1), _LANE), max_tT, _round_up(T, _LANE))
    tT = max(_LANE, (tT // _LANE) * _LANE)
    T_pad = _round_up(T, tT)

    if (T_pad != T) or (C_pad != C):
        x_p = jnp.pad(x, ((0, 0), (0, T_pad - T), (0, C_pad - C)))
    else:
        x_p = x

    n_t = T_pad // tT
    grid = (B, n_t)

    out_padded = pl.pallas_call(
        _transpose_kernel,
        out_shape=jax.ShapeDtypeStruct((B, C_pad, T_pad), x.dtype),
        grid_spec=pltpu.PrefetchScalarGridSpec(
            num_scalar_prefetch=0,
            grid=grid,
            in_specs=[pl.BlockSpec((1, tT, C_pad), lambda b, t: (b, t, 0))],
            out_specs=pl.BlockSpec((1, C_pad, tT), lambda b, t: (b, 0, t)),
        ),
        compiler_params=pltpu.CompilerParams(
            # Every grid step writes a disjoint output tile -> both axes parallel;
            # on v7x this shards (B, T_tiles) across the 2 TensorCores.
            dimension_semantics=("parallel", "parallel"),
        ),
    )(x_p)

    if (T_pad != T) or (C_pad != C):
        return out_padded[:, :C, :T]
    return out_padded


if __name__ == "__main__":
    key = jax.random.PRNGKey(0)
    B, T, C = 2, 8, 32  # small (batch, time, hidden) activation
    x = jax.random.normal(key, (B, T, C), dtype=jnp.float32)

    y = pallas_transpose(x, dims=(1, 2))
    y = jax.block_until_ready(y)

    y_ref = jnp.transpose(x, (0, 2, 1))  # torch x.transpose(1, 2) reference
    assert y.shape == (B, C, T), y.shape
    assert y.dtype == x.dtype
    assert jnp.array_equal(y, y_ref), "Pallas transpose mismatch vs reference"

    print("KERNEL_OK")
</pallas_src>

<mosaic_0001>
module attributes {stable_mosaic.version = 11 : i64} {
  func.func @_transpose_kernel(%arg0: i32, %arg1: i32, %arg2: memref<1x128x128xf32, #tpu.memory_space<vmem>>, %arg3: memref<1x128x128xf32, #tpu.memory_space<vmem>>) attributes {dimension_semantics = [#tpu.dimension_semantics<parallel>, #tpu.dimension_semantics<parallel>], iteration_bounds = array<i64: 2, 1>, scalar_prefetch = 0 : i64, scratch_operands = 0 : i64, tpu.core_type = #tpu.core_type<tc>, window_params = [{transform_indices = @transform_0, window_bounds = array<i64: 1, 128, 128>}, {transform_indices = @transform_1, window_bounds = array<i64: 1, 128, 128>}]} {
    %c0 = arith.constant 0 : index
    %c0_0 = arith.constant 0 : index
    %c0_1 = arith.constant 0 : index
    %0 = vector.load %arg2[%c0, %c0_0, %c0_1] : memref<1x128x128xf32, #tpu.memory_space<vmem>>, vector<1x128x128xf32>
    %1 = tpu.transpose %0, [0, 2, 1] : vector<1x128x128xf32> -> vector<1x128x128xf32>
    %c0_2 = arith.constant 0 : index
    %c0_3 = arith.constant 0 : index
    %c0_4 = arith.constant 0 : index
    %2 = vector.load %arg3[%c0_2, %c0_3, %c0_4] : memref<1x128x128xf32, #tpu.memory_space<vmem>>, vector<1x128x128xf32>
    tpu.vector_store %arg3[%c0_2, %c0_3, %c0_4], %1 {strides = array<i32>} : memref<1x128x128xf32, #tpu.memory_space<vmem>>, vector<1x128x128xf32>,
    return
  }
  func.func @transform_0(%arg0: i32, %arg1: i32) -> (i32, i32, i32) {
    %c0_i32 = arith.constant 0 : i32
    %c0_i32_0 = arith.constant 0 : i32
    return %arg0, %arg1, %c0_i32 : i32, i32, i32
  }
  func.func @transform_1(%arg0: i32, %arg1: i32) -> (i32, i32, i32) {
    %c0_i32 = arith.constant 0 : i32
    %c0_i32_0 = arith.constant 0 : i32
    return %arg0, %c0_i32, %arg1 : i32, i32, i32
  }
}

</mosaic_0001>

<llo_original>
// kernel: tpu_custom_call.1
$region0: #{tpu_custom_call.1}
  #allocation0 [shape = 'u32[]', space=smem, size = 0x4, offset = 0x4, fixed_abs, tag = 'smem constant byte address 0x4 - core index']
  #allocation1 [shape = 'u32[144,128]{1,0:T(1,128)}', space=vmem, size = 0x12000, scoped, tag = 'internal scratch']
  %s0 = inlined_call_operand.hbm [shape: f32[2,128,128], index: 0, kind: input, shape index: {}]
  %s1 = inlined_call_operand.hbm [shape: f32[2,128,128], index: 1, kind: output, shape index: {}]
  %s2 = sld [smem:[#allocation0]]
  $region41: #{tpu_custom_call.1} parent=0
    _
  %s4 = ssub.s32 1, %s2
  %s5 = scalar_select 0, %s4, %s2
  $region1: #{tpu_custom_call.1} parent=0
    #allocation2 [shape = 'u8[131072]{0}', space=vmem, size = 0x20000, scoped, tag = 'input window, operand 0']
    #allocation3 [shape = 's32[2]{0}', space=sflag, size = 0x8, scoped, tag = 'scoped memory for tpu_custom_call.1']
    #allocation4 [shape = 's32[2]{0}', space=sflag, size = 0x8, scoped, tag = 'scoped memory for tpu_custom_call.1']
    #allocation5 [shape = 'u8[131072]{0}', space=vmem, size = 0x20000, scoped, tag = 'output window, operand 0']
    %6 = vsyncpa [#allocation3], 0
    %s7 = scalar_lea.sflag [#allocation3], 1
    %8 = vsyncpa %s7, 0
    %9 = vsyncpa [#allocation4], 0
    %s10 = scalar_lea.sflag [#allocation4], 1
    %11 = vsyncpa %s10, 0
    loop: start=0, step=1, limit=4
    $region2: #{tpu_custom_call.1} parent=1 // loop_pre_header
      _
    $region3: #{tpu_custom_call.1} parent=1 // loop_header
      %s13 = sphi 0, %s17
      %p14 = scmp.ge.s32.totalorder %s13, 4
      %s20 = sphi 0, %s32
      %s21 = sphi 0, %s28
      %s22 = sphi 0, %s20
      %s23 = sphi 0, %s21
      %s24 = sphi 0, %s22
      %s25 = sphi 0, %s23
      %s37 = sphi 0, %s39
      %s40 = sphi 0, %s37
      %s41 = sphi 0, %s40
      %s57 = sphi 0, %s41
      %s65 = sphi 0, %s67
      %s68 = sphi 0, %s65
      %s69 = sphi 0, %s68
      %s85 = sphi 0, %s69
    $region4: #{tpu_custom_call.1} parent=1 // loop_header_branch
      %16 = sbr.rel (%p14) target = $region8
    $region5: #{tpu_custom_call.1} parent=1 // loop_body
      %s18 = ssub.s32 %s13, 1
      %s19 = ssub.s32 %s13, 2
      %s26 = sadd.s32 1, %s21
      %p27 = scmp.ge.s32.totalorder %s26, 1
      %s28 = scalar_select %p27, 0, %s26
      %s29 = sadd.s32 1, %s20
      %s30 = scalar_select %p27, %s29, %s20
      %p31 = scmp.ge.s32.totalorder %s30, 2
      %s32 = scalar_select %p31, 0, %s30
      %s33 = ssub.s32 %s20, %s32
      %s34 = ssub.s32 %s21, %s28
      %s35 = sor.u32 %s33, %s34
      %p36 = scmp.eq.s32.totalorder %s35, 0
      %s38 = sadd.s32 %s37, 1
      %s39 = scalar_select %p36, %s37, %s38
      %p42 = pneg %p36
      %p43 = scmp.eq.s32.totalorder %s13, 1
      %p44 = por %p42, %p43
      %p45 = scmp.ne.s32.totalorder %s37, %s40
      %p46 = scmp.eq.s32.totalorder %s13, 0
      %p47 = por %p45, %p46
      %p48 = scmp.ne.s32.totalorder %s37, %s40
      %p49 = scmp.eq.s32.totalorder %s18, 1
      %p50 = por %p48, %p49
      %p51 = scmp.ne.s32.totalorder %s40, %s41
      %p52 = scmp.eq.s32.totalorder %s18, 0
      %p53 = por %p51, %p52
      %p54 = scmp.ne.s32.totalorder %s40, %s41
      %p55 = scmp.eq.s32.totalorder %s19, 1
      %p56 = por %p54, %p55
      %p58 = scmp.ne.s32.totalorder %s41, %s57
      %p59 = scmp.eq.s32.totalorder %s19, 0
      %p60 = por %p58, %p59
      %s61 = ssub.s32 %s20, %s32
      %s62 = ssub.s32 %s21, %s28
      %s63 = sor.u32 %s61, %s62
      %p64 = scmp.eq.s32.totalorder %s63, 0
      %s66 = sadd.s32 %s65, 1
      %s67 = scalar_select %p64, %s65, %s66
      %p70 = pneg %p64
      %p71 = scmp.eq.s32.totalorder %s13, 1
      %p72 = por %p70, %p71
      %p73 = scmp.ne.s32.totalorder %s65, %s68
      %p74 = scmp.eq.s32.totalorder %s13, 0
      %p75 = por %p73, %p74
      %p76 = scmp.ne.s32.totalorder %s65, %s68
      %p77 = scmp.eq.s32.totalorder %s18, 1
      %p78 = por %p76, %p77
      %p79 = scmp.ne.s32.totalorder %s68, %s69
      %p80 = scmp.eq.s32.totalorder %s18, 0
      %p81 = por %p79, %p80
      %p82 = scmp.ne.s32.totalorder %s68, %s69
      %p83 = scmp.eq.s32.totalorder %s19, 1
      %p84 = por %p82, %p83
      %p86 = scmp.ne.s32.totalorder %s69, %s85
      %p87 = scmp.eq.s32.totalorder %s19, 0
      %p88 = por %p86, %p87
      %p89 = scmp.le.s32.totalorder 1, %s13
      %p90 = scmp.lt.s32.totalorder %s13, 3
      %p91 = pnand %p89, %p90
      %p92 = pneg %p91
      // Predicated region
      $region9: #{tpu_custom_call.1} parent=5 // pred_check
        _
      $region10: #{tpu_custom_call.1} parent=5 // pred_check_branch
        %94 = sbr.rel (%p91) target = $region12
      $region11: #{tpu_custom_call.1} parent=5 // pred_region
        %s95 = ssub.s32 %s13, 1
      $region12: #{tpu_custom_call.1} parent=5 // pred_fallthru
        _
      %p96 = scmp.lt.s32.totalorder %s13, 2
      // Predicated region
      $region13: #{tpu_custom_call.1} parent=5 // pred_check
        %p97 = pneg %p96
      $region14: #{tpu_custom_call.1} parent=5 // pred_check_branch
        %99 = sbr.rel (%p97) target = $region16
      $region15: #{tpu_custom_call.1} parent=5 // pred_region
        // Predicated region
        $region17: #{tpu_custom_call.1} parent=15 // pred_check
          %p100 = pneg %p47
        $region18: #{tpu_custom_call.1} parent=15 // pred_check_branch
          %102 = sbr.rel (%p100) target = $region20
        $region19: #{tpu_custom_call.1} parent=15 // pred_region
          %s103 = sand.u32 %s37, 1
          %s104 = scalar_lea.sflag [#allocation3], %s103
          %s105 = sand.u32 %s37, 1
          %s106 = smul.addr %s105, 128
          %s107 = scalar_lea.vmem [#allocation2], %s106
          %s108 = smul.u32 16, %s21
          %s110 = ssub.s32 2048, 2048
          %111 = vsyncadd %s104, %s110
          %s112 = smul.addr %s20, 16
          %s113 = sadd.s32 %s108, %s112
          %s114 = smul.addr %s113, 128
          %s115 = scalar_lea.hbm %s0, %s114
          %s116 = sshll.u32 %s107, 4
          %s117 = int_to_ptr.vmem [resolvable:$true] %s116
          %122 = dma.hbm_to_vmem [thread:$0]  %s115, 2048, %s117, %s104, 128, 128, 8
        $region20: #{tpu_custom_call.1} parent=15 // pred_fallthru
          _
      $region16: #{tpu_custom_call.1} parent=5 // pred_fallthru
        _
      %p123 = scmp.le.s32.totalorder 1, %s13
      %p124 = scmp.lt.s32.totalorder %s13, 3
      %p125 = pnand %p123, %p124
      %p126 = pneg %p125
      // Predicated region
      $region21: #{tpu_custom_call.1} parent=5 // pred_check
        _
      $region22: #{tpu_custom_call.1} parent=5 // pred_check_branch
        %128 = sbr.rel (%p125) target = $region24
      $region23: #{tpu_custom_call.1} parent=5 // pred_region
        %s129 = ssub.s32 %s13, 1
        %s130 = sand.u32 %s40, 1
        %s131 = scalar_lea.sflag [#allocation3], %s130
        %s132 = sand.u32 %s40, 1
        %s133 = smul.addr %s132, 128
        %s134 = scalar_lea.vmem [#allocation2], %s133
        // Predicated region
        $region25: #{tpu_custom_call.1} parent=23 // pred_check
          %p135 = pneg %p53
        $region26: #{tpu_custom_call.1} parent=23 // pred_check_branch
          %137 = sbr.rel (%p135) target = $region28
        $region27: #{tpu_custom_call.1} parent=23 // pred_region
          %138 = dma.done %s131, 2048
        $region28: #{tpu_custom_call.1} parent=23 // pred_fallthru
          _
        %s139 = sand.u32 %s40, 1
        %s140 = scalar_lea.sflag [#allocation3], %s139
        %s141 = sand.u32 %s40, 1
        %s142 = smul.addr %s141, 128
        %s143 = scalar_lea.vmem [#allocation2], %s142
        %p144 = pneg %p53
        %p145 = pneg %p50
        %p146 = pneg %p81
        %p147 = pneg %p78
        %s148 = sand.u32 %s68, 1
        %s149 = scalar_lea.sflag [#allocation4], %s148
        %s150 = sand.u32 %s68, 1
        %s151 = smul.addr %s150, 128
        %s152 = scalar_lea.vmem [#allocation5], %s151
        %s153 = smul.u32 16, %s23
        %v154 = vld [vmem:[%s134] sm:$0xff]
        %v155 = vld [vmem:[%s134 + $0x8] sm:$0xff]
        %v156 = vld [vmem:[%s134 + $0x10] sm:$0xff]
        %v157 = vld [vmem:[%s134 + $0x18] sm:$0xff]
        %v158 = vld [vmem:[%s134 + $0x20] sm:$0xff]
        %v159 = vld [vmem:[%s134 + $0x28] sm:$0xff]
        %v160 = vld [vmem:[%s134 + $0x30] sm:$0xff]
        %v161 = vld [vmem:[%s134 + $0x38] sm:$0xff]
        %v162 = vld [vmem:[%s134 + $0x40] sm:$0xff]
        %v163 = vld [vmem:[%s134 + $0x48] sm:$0xff]
        %v164 = vld [vmem:[%s134 + $0x50] sm:$0xff]
        %v165 = vld [vmem:[%s134 + $0x58] sm:$0xff]
        %v166 = vld [vmem:[%s134 + $0x60] sm:$0xff]
        %v167 = vld [vmem:[%s134 + $0x68] sm:$0xff]
        %v168 = vld [vmem:[%s134 + $0x70] sm:$0xff]
        %v169 = vld [vmem:[%s134 + $0x78] sm:$0xff]
        %170 = vxpose.xlu0.b32.start [1/16] %v154, 128
        %171 = vxpose.xlu0.b32.cont [2/16] %v155, 128
        %172 = vxpose.xlu0.b32.cont [3/16] %v156, 128
        %173 = vxpose.xlu0.b32.cont [4/16] %v157, 128
        %174 = vxpose.xlu0.b32.cont [5/16] %v158, 128
        %175 = vxpose.xlu0.b32.cont [6/16] %v159, 128
        %176 = vxpose.xlu0.b32.cont [7/16] %v160, 128
        %177 = vxpose.xlu0.b32.cont [8/16] %v161, 128
        %178 = vxpose.xlu0.b32.cont [9/16] %v162, 128
        %179 = vxpose.xlu0.b32.cont [10/16] %v163, 128
        %180 = vxpose.xlu0.b32.cont [11/16] %v164, 128
        %181 = vxpose.xlu0.b32.cont [12/16] %v165, 128
        %182 = vxpose.xlu0.b32.cont [13/16] %v166, 128
        %183 = vxpose.xlu0.b32.cont [14/16] %v167, 128
        %184 = vxpose.xlu0.b32.cont [15/16] %v168, 128
        %185 = vxpose.xlu0.b32.end [16/16] %v169, 128
        %v186 = vpop.trf.xlu0
        %v187 = vpop.trf.xlu0
        %v188 = vpop.trf.xlu0
        %v189 = vpop.trf.xlu0
        %v190 = vpop.trf.xlu0
        %v191 = vpop.trf.xlu0
        %v192 = vpop.trf.xlu0
        %v193 = vpop.trf.xlu0
        %v194 = vpop.trf.xlu0
        %v195 = vpop.trf.xlu0
        %v196 = vpop.trf.xlu0
        %v197 = vpop.trf.xlu0
        %v198 = vpop.trf.xlu0
        %v199 = vpop.trf.xlu0
        %v200 = vpop.trf.xlu0
        %v201 = vpop.trf.xlu0
        %202 = vst [vmem:[%s152] sm:$0xff] %v186
        %203 = vst [vmem:[%s152 + $0x8] sm:$0xff] %v187
        %204 = vst [vmem:[%s152 + $0x10] sm:$0xff] %v188
        %205 = vst [vmem:[%s152 + $0x18] sm:$0xff] %v189
        %206 = vst [vmem:[%s152 + $0x20] sm:$0xff] %v190
        %207 = vst [vmem:[%s152 + $0x28] sm:$0xff] %v191
        %208 = vst [vmem:[%s152 + $0x30] sm:$0xff] %v192
        %209 = vst [vmem:[%s152 + $0x38] sm:$0xff] %v193
        %210 = vst [vmem:[%s152 + $0x40] sm:$0xff] %v194
        %211 = vst [vmem:[%s152 + $0x48] sm:$0xff] %v195
        %212 = vst [vmem:[%s152 + $0x50] sm:$0xff] %v196
        %213 = vst [vmem:[%s152 + $0x58] sm:$0xff] %v197
        %214 = vst [vmem:[%s152 + $0x60] sm:$0xff] %v198
        %215 = vst [vmem:[%s152 + $0x68] sm:$0xff] %v199
        %216 = vst [vmem:[%s152 + $0x70] sm:$0xff] %v200
        %217 = vst [vmem:[%s152 + $0x78] sm:$0xff] %v201
        %s218 = sand.u32 %s68, 1
        %s219 = scalar_lea.sflag [#allocation4], %s218
        %s220 = sand.u32 %s68, 1
        %s221 = smul.addr %s220, 128
        %s222 = scalar_lea.vmem [#allocation5], %s221
        // Predicated region
        $region29: #{tpu_custom_call.1} parent=23 // pred_check
          %p223 = pneg %p78
        $region30: #{tpu_custom_call.1} parent=23 // pred_check_branch
          %225 = sbr.rel (%p223) target = $region32
        $region31: #{tpu_custom_call.1} parent=23 // pred_region
          %s227 = ssub.s32 2048, 2048
          %228 = vsyncadd %s219, %s227
          %s229 = smul.addr %s22, 16
          %s230 = sadd.s32 %s23, %s229
          %s231 = smul.addr %s230, 128
          %s232 = scalar_lea.hbm %s1, %s231
          %s233 = sshll.u32 %s222, 4
          %s234 = int_to_ptr.vmem [resolvable:$true] %s233
          %239 = dma.vmem_to_hbm [thread:$0]  %s234, 2048, %s232, %s219, 128, 128, 8
        $region32: #{tpu_custom_call.1} parent=23 // pred_fallthru
          _
      $region24: #{tpu_custom_call.1} parent=5 // pred_fallthru
        _
      %p240 = scmp.le.s32.totalorder 2, %s13
      // Predicated region
      $region33: #{tpu_custom_call.1} parent=5 // pred_check
        %p241 = pneg %p240
      $region34: #{tpu_custom_call.1} parent=5 // pred_check_branch
        %243 = sbr.rel (%p241) target = $region36
      $region35: #{tpu_custom_call.1} parent=5 // pred_region
        %s244 = ssub.s32 %s13, 2
        // Predicated region
        $region37: #{tpu_custom_call.1} parent=35 // pred_check
          %p245 = pneg %p84
        $region38: #{tpu_custom_call.1} parent=35 // pred_check_branch
          %247 = sbr.rel (%p245) target = $region40
        $region39: #{tpu_custom_call.1} parent=35 // pred_region
          %s248 = sand.u32 %s69, 1
          %s249 = scalar_lea.sflag [#allocation4], %s248
          %s250 = sand.u32 %s69, 1
          %s251 = smul.addr %s250, 128
          %s252 = scalar_lea.vmem [#allocation5], %s251
          %253 = dma.done %s249, 2048
        $region40: #{tpu_custom_call.1} parent=35 // pred_fallthru
          _
      $region36: #{tpu_custom_call.1} parent=5 // pred_fallthru
        _
    $region6: #{tpu_custom_call.1} parent=1 // loop_footer
      %s17 = sadd.s32 1, %s13
    $region7: #{tpu_custom_call.1} parent=1 // loop_footer_branch
      %12 = sbr.rel target = $region3
    $region8: #{tpu_custom_call.1} parent=1 // loop_exit
      _
    %254 = vsyncpa [#allocation3], 1
    %s255 = scalar_lea.sflag [#allocation3], 1
    %256 = vsyncpa %s255, 1
    %257 = vsyncpa [#allocation4], 1
    %s258 = scalar_lea.sflag [#allocation4], 1
    %259 = vsyncpa %s258, 1

</llo_original>
